<compile_context>
chip_gen: v7x
topology: tpu7x:2x2x1
jax: 0.10.0
libtpu: 0.0.40
codegen_flags: <defaults>
</compile_context>

<pallas_src>
import functools

import jax
import jax.numpy as jnp
from jax.experimental import pallas as pl
from jax.experimental.pallas import tpu as pltpu

_LANES = 128
_MAX_BLOCK_ROWS = 512  # ~256 KiB per f32 input block; safe for v7x's smaller VMEM


def _koopman_loss_kernel(t_ref, p_ref, o_ref, acc_ref, *, inv_n):
    step = pl.program_id(0)

    @pl.when(step == 0)
    def _():
        acc_ref[...] = jnp.zeros_like(acc_ref)

    # Elementwise squared difference, accumulated into a block-shaped f32
    # partial sum (VPU only; no per-step cross-lane reduction, no per-step
    # scalar scale).
    d = t_ref[...].astype(jnp.float32) - p_ref[...].astype(jnp.float32)
    acc_ref[...] += d * d

    @pl.when(step == pl.num_programs(0) - 1)
    def _():
        # One XLU reduction + one scalar multiply at finalize, scalar out via SMEM.
        o_ref[0] = jnp.sum(acc_ref[...]) * inv_n


def koopman_prediction_loss(target_traj, predicted_traj):
    """target_traj, predicted_traj: (numShifts, batch, stateDim) arrays.

    Returns a scalar float32 loss == sum_m mse_loss(target[m], pred[m]).
    """
    assert target_traj.shape == predicted_traj.shape
    num_shifts, batch, state_dim = target_traj.shape
    inv_n = 1.0 / float(batch * state_dim)  # elements per trajectory step

    total = num_shifts * batch * state_dim
    rows = pl.cdiv(total, _LANES)
    if rows > _MAX_BLOCK_ROWS:
        block_rows = _MAX_BLOCK_ROWS
    else:
        block_rows = pl.cdiv(rows, 8) * 8  # keep sublane dim a multiple of 8
    rows_padded = pl.cdiv(rows, block_rows) * block_rows
    total_padded = rows_padded * _LANES

    def _lane_dense(x):
        x = x.reshape(-1).astype(jnp.float32)
        if total_padded != total:
            # Both inputs padded with the same zeros -> zero contribution.
            x = jnp.pad(x, (0, total_padded - total))
        return x.reshape(rows_padded, _LANES)

    t2 = _lane_dense(target_traj)
    p2 = _lane_dense(predicted_traj)

    kernel = functools.partial(_koopman_loss_kernel, inv_n=inv_n)

    # TODO(synk): for very large inputs on v7x, add a leading size-2 "parallel"
    # grid axis over row halves (one partial sum per TensorCore) and add the
    # two partials in the wrapper.
    out = pl.pallas_call(
        kernel,
        out_shape=jax.ShapeDtypeStruct((1,), jnp.float32),
        grid_spec=pltpu.PrefetchScalarGridSpec(
            num_scalar_prefetch=0,
            grid=(rows_padded // block_rows,),
            in_specs=[
                pl.BlockSpec((block_rows, _LANES), lambda r: (r, 0)),
                pl.BlockSpec((block_rows, _LANES), lambda r: (r, 0)),
            ],
            out_specs=pl.BlockSpec(memory_space=pltpu.MemorySpace.SMEM),
            scratch_shapes=[pltpu.VMEM((block_rows, _LANES), jnp.float32)],
        ),
        compiler_params=pltpu.CompilerParams(
            dimension_semantics=("arbitrary",),  # sequential accumulation axis
        ),
    )(t2, p2)
    return out[0]


def _reference_loss(target_traj, predicted_traj):
    # Pure-JAX reference mirroring the PyTorch loop of F.mse_loss calls.
    d = target_traj.astype(jnp.float32) - predicted_traj.astype(jnp.float32)
    return jnp.sum(jnp.mean(d * d, axis=(1, 2)))


if __name__ == "__main__":
    # LossFunction has no learnable parameters; only params['numShifts'].
    params = {"numShifts": 8}
    num_shifts = params["numShifts"]
    batch, state_dim = 8, 32  # small shapes consistent with a Koopman state trajectory

    key = jax.random.PRNGKey(0)
    k_t, k_p = jax.random.split(key)
    target = jax.random.normal(k_t, (num_shifts, batch, state_dim), dtype=jnp.float32)
    predicted = jax.random.normal(k_p, (num_shifts, batch, state_dim), dtype=jnp.float32)

    loss = jax.block_until_ready(koopman_prediction_loss(target, predicted))
    ref = jax.block_until_ready(_reference_loss(target, predicted))

    assert jnp.allclose(loss, ref, rtol=1e-5, atol=1e-5), (loss, ref)
    print("KERNEL_OK")
</pallas_src>

<mosaic_0001>
module attributes {stable_mosaic.version = 11 : i64} {
  func.func @_koopman_loss_kernel(%arg0: i32, %arg1: memref<16x128xf32, #tpu.memory_space<vmem>>, %arg2: memref<16x128xf32, #tpu.memory_space<vmem>>, %arg3: memref<1xf32, #tpu.memory_space<smem>>, %arg4: memref<16x128xf32, #tpu.memory_space<vmem>>) attributes {dimension_semantics = [#tpu.dimension_semantics<arbitrary>], iteration_bounds = array<i64: 1>, scalar_prefetch = 0 : i64, scratch_operands = 1 : i64, tpu.core_type = #tpu.core_type<tc>, window_params = [{transform_indices = @transform_0, window_bounds = array<i64: 16, 128>}, {transform_indices = @transform_1, window_bounds = array<i64: 16, 128>}, {transform_indices = @transform_2, window_bounds = array<i64: 1>}]} {
    %c0_i32 = arith.constant 0 : i32
    %0 = arith.cmpi eq, %arg0, %c0_i32 : i32
    %1 = arith.extui %0 : i1 to i32
    %c0_i32_0 = arith.constant 0 : i32
    %2 = arith.cmpi ne, %1, %c0_i32_0 : i32
    scf.if %2 {
      %cst = arith.constant 0.000000e+00 : f32
      %13 = vector.broadcast %cst : f32 to vector<16x128xf32>
      %c0_10 = arith.constant 0 : index
      %c0_11 = arith.constant 0 : index
      %14 = vector.load %arg4[%c0_10, %c0_11] : memref<16x128xf32, #tpu.memory_space<vmem>>, vector<16x128xf32>
      tpu.vector_store %arg4[%c0_10, %c0_11], %13 {strides = array<i32>} : memref<16x128xf32, #tpu.memory_space<vmem>>, vector<16x128xf32>,
    } else {
    }
    %c0 = arith.constant 0 : index
    %c0_1 = arith.constant 0 : index
    %3 = vector.load %arg1[%c0, %c0_1] : memref<16x128xf32, #tpu.memory_space<vmem>>, vector<16x128xf32>
    %c0_2 = arith.constant 0 : index
    %c0_3 = arith.constant 0 : index
    %4 = vector.load %arg2[%c0_2, %c0_3] : memref<16x128xf32, #tpu.memory_space<vmem>>, vector<16x128xf32>
    %5 = arith.subf %3, %4 : vector<16x128xf32>
    %c0_4 = arith.constant 0 : index
    %c0_5 = arith.constant 0 : index
    %6 = vector.load %arg4[%c0_4, %c0_5] : memref<16x128xf32, #tpu.memory_space<vmem>>, vector<16x128xf32>
    %7 = arith.mulf %5, %5 : vector<16x128xf32>
    %8 = arith.addf %6, %7 : vector<16x128xf32>
    %c0_6 = arith.constant 0 : index
    %c0_7 = arith.constant 0 : index
    %9 = vector.load %arg4[%c0_6, %c0_7] : memref<16x128xf32, #tpu.memory_space<vmem>>, vector<16x128xf32>
    tpu.vector_store %arg4[%c0_6, %c0_7], %8 {strides = array<i32>} : memref<16x128xf32, #tpu.memory_space<vmem>>, vector<16x128xf32>,
    %c0_i32_8 = arith.constant 0 : i32
    %10 = arith.cmpi eq, %arg0, %c0_i32_8 : i32
    %11 = arith.extui %10 : i1 to i32
    %c0_i32_9 = arith.constant 0 : i32
    %12 = arith.cmpi ne, %11, %c0_i32_9 : i32
    scf.if %12 {
      %c0_10 = arith.constant 0 : index
      %c0_11 = arith.constant 0 : index
      %13 = vector.load %arg4[%c0_10, %c0_11] : memref<16x128xf32, #tpu.memory_space<vmem>>, vector<16x128xf32>
      %14 = vector.shape_cast %13 : vector<16x128xf32> to vector<1x16x128xf32>
      %cst = arith.constant dense<0.000000e+00> : vector<1xf32>
      %15 = vector.multi_reduction <add>, %14, %cst [1, 2] : vector<1x16x128xf32> to vector<1xf32>
      %16 = vector.shape_cast %15 : vector<1xf32> to vector<1x1x1xf32>
      %17 = vector.extract %16[0, 0, 0] : f32 from vector<1x1x1xf32>
      %cst_12 = arith.constant 3.906250e-03 : f32
      %18 = arith.mulf %17, %cst_12 : f32
      %c0_13 = arith.constant 0 : index
      %19 = memref.load %arg3[%c0_13] : memref<1xf32, #tpu.memory_space<smem>>
      memref.store %18, %arg3[%c0_13] : memref<1xf32, #tpu.memory_space<smem>>
    } else {
    }
    return
  }
  func.func @transform_0(%arg0: i32) -> (i32, i32) {
    %c0_i32 = arith.constant 0 : i32
    %c0_i32_0 = arith.constant 0 : i32
    return %arg0, %c0_i32 : i32, i32
  }
  func.func @transform_1(%arg0: i32) -> (i32, i32) {
    %c0_i32 = arith.constant 0 : i32
    %c0_i32_0 = arith.constant 0 : i32
    return %arg0, %c0_i32 : i32, i32
  }
  func.func @transform_2(%arg0: i32) -> i32 {
    %c0_i32 = arith.constant 0 : i32
    %c0_i32_0 = arith.constant 0 : i32
    return %c0_i32 : i32
  }
}

</mosaic_0001>

<llo_original>
// kernel: tpu_custom_call.1
$region0: #{tpu_custom_call.1}
  #allocation0 [shape = 'u32[]', space=smem, size = 0x4, offset = 0x4, fixed_abs, tag = 'smem constant byte address 0x4 - core index']
  #allocation1 [shape = 'u32[144,128]{1,0:T(1,128)}', space=vmem, size = 0x12000, scoped, tag = 'internal scratch']
  #allocation2 [shape = 'f32[16,128]{1,0:T(8,128)}', space=vmem, size = 0x2000, scoped, tag = 'scratch operand']
  %s0 = inlined_call_operand.hbm [shape: f32[16,128], index: 0, kind: input, shape index: {}]
  %s1 = inlined_call_operand.hbm [shape: f32[16,128], index: 1, kind: input, shape index: {}]
  %s2 = inlined_call_operand.hbm [shape: f32[1], index: 2, kind: output, shape index: {}]
  %s3 = sld [smem:[#allocation0]]
  $region34: #{tpu_custom_call.1} parent=0
    _
  %s5 = ssub.s32 1, %s3
  %s6 = scalar_select 0, %s5, %s3
  $region1: #{tpu_custom_call.1} parent=0
    #allocation3 [shape = 'u8[8192]{0}', space=vmem, size = 0x2000, scoped, tag = 'input window, operand 0, single buffered']
    #allocation4 [shape = 's32[1]{0}', space=sflag, size = 0x4, scoped, tag = 'scoped memory for tpu_custom_call.1']
    #allocation5 [shape = 's32[1]{0}', space=sflag, size = 0x4, scoped, tag = 'scoped memory for tpu_custom_call.1']
    #allocation6 [shape = 'u8[8192]{0}', space=vmem, size = 0x2000, scoped, tag = 'input window, operand 1, single buffered']
    #allocation7 [shape = 's32[1]{0}', space=sflag, size = 0x4, scoped, tag = 'scoped memory for tpu_custom_call.1']
    #allocation8 [shape = 'u8[512]{0}', space=smem, size = 0x200, scoped, tag = 'output window, operand 0, single buffered']
    %7 = vsyncpa [#allocation4], 0
    %8 = vsyncpa [#allocation7], 0
    %9 = vsyncpa [#allocation5], 0
    // Predicated region
    $region2: #{tpu_custom_call.1} parent=1 // pred_check
      _
    $region3: #{tpu_custom_call.1} parent=1 // pred_check_branch
      %11 = sbr.rel (0) target = $region5
    $region4: #{tpu_custom_call.1} parent=1 // pred_region
      %s13 = ssub.s32 256, 256
      %14 = vsyncadd [#allocation4], %s13
      %s15 = sshll.u32 [#allocation3], 4
      %s16 = int_to_ptr.vmem [resolvable:$true] %s15
      %21 = dma.hbm_to_vmem [thread:$0]  %s0, 256, %s16, [#allocation4], 128, 128, 8
    $region5: #{tpu_custom_call.1} parent=1 // pred_fallthru
      _
    // Predicated region
    $region6: #{tpu_custom_call.1} parent=1 // pred_check
      _
    $region7: #{tpu_custom_call.1} parent=1 // pred_check_branch
      %23 = sbr.rel (0) target = $region9
    $region8: #{tpu_custom_call.1} parent=1 // pred_region
      %s25 = ssub.s32 256, 256
      %26 = vsyncadd [#allocation7], %s25
      %s27 = sshll.u32 [#allocation6], 4
      %s28 = int_to_ptr.vmem [resolvable:$true] %s27
      %33 = dma.hbm_to_vmem [thread:$0]  %s1, 256, %s28, [#allocation7], 128, 128, 8
    $region9: #{tpu_custom_call.1} parent=1 // pred_fallthru
      _
    // Predicated region
    $region10: #{tpu_custom_call.1} parent=1 // pred_check
      _
    $region11: #{tpu_custom_call.1} parent=1 // pred_check_branch
      %35 = sbr.rel (0) target = $region13
    $region12: #{tpu_custom_call.1} parent=1 // pred_region
      %36 = dma.done [#allocation4], 256
    $region13: #{tpu_custom_call.1} parent=1 // pred_fallthru
      _
    // Predicated region
    $region14: #{tpu_custom_call.1} parent=1 // pred_check
      _
    $region15: #{tpu_custom_call.1} parent=1 // pred_check_branch
      %38 = sbr.rel (0) target = $region17
    $region16: #{tpu_custom_call.1} parent=1 // pred_region
      %39 = dma.done [#allocation7], 256
    $region17: #{tpu_custom_call.1} parent=1 // pred_fallthru
      _
    %p40 = scmp.eq.s32.totalorder 0, 0
    // Predicated region
    $region18: #{tpu_custom_call.1} parent=1 // pred_check
      %p41 = pneg %p40
    $region19: #{tpu_custom_call.1} parent=1 // pred_check_branch
      %43 = sbr.rel (%p41) target = $region21
    $region20: #{tpu_custom_call.1} parent=1 // pred_region
      %44 = vst [vmem:[#allocation2] sm:$0xff] 0.0
      %45 = vst [vmem:[#allocation2 + $0x8] sm:$0xff] 0.0
    $region21: #{tpu_custom_call.1} parent=1 // pred_fallthru
      _
    %v46 = vld [vmem:[#allocation3] sm:$0xff]
    %v47 = vld [vmem:[#allocation3 + $0x8] sm:$0xff]
    %v48 = vld [vmem:[#allocation6] sm:$0xff]
    %v49 = vld [vmem:[#allocation6 + $0x8] sm:$0xff]
    %v50 = vsub.f32 %v46, %v48
    %v51 = vsub.f32 %v47, %v49
    %v52 = vld [vmem:[#allocation2] sm:$0xff]
    %v53 = vld [vmem:[#allocation2 + $0x8] sm:$0xff]
    %v54 = vmul.f32 %v50, %v50
    %v55 = vmul.f32 %v51, %v51
    %v56 = vadd.f32 %v52, %v54
    %v57 = vadd.f32 %v53, %v55
    %58 = vst [vmem:[#allocation2] sm:$0xff] %v56
    %59 = vst [vmem:[#allocation2 + $0x8] sm:$0xff] %v57
    // Predicated region
    $region22: #{tpu_custom_call.1} parent=1 // pred_check
      %p60 = pneg %p40
    $region23: #{tpu_custom_call.1} parent=1 // pred_check_branch
      %62 = sbr.rel (%p60) target = $region25
    $region24: #{tpu_custom_call.1} parent=1 // pred_region
      %v63 = vld [vmem:[#allocation2] sm:$0xff]
      %v64 = vld [vmem:[#allocation2 + $0x8] sm:$0xff]
      %v65 = vadd.f32 %v63, %v64
      %66 = vadd.xlane.f32.xlu0 %v65
      %v67 = vpop.xlane.xlu0 %66
      %v68 = vrot.slane %v67, 4
      %v69 = vadd.f32 %v67, %v68
      %v70 = vrot.slane %v69, 2
      %v71 = vadd.f32 %v69, %v70
      %v72 = vrot.slane %v71, 1
      %v73 = vadd.f32 %v71, %v72
      %s74 = vtos %v73
      %s75 = smul.f32 %s74, 0.00390625
      %s76 = scalar_lea.smem [#allocation8], 0
      %77 = sst [smem:[%s76]] %s75
    $region25: #{tpu_custom_call.1} parent=1 // pred_fallthru
      _
    // Predicated region
    $region26: #{tpu_custom_call.1} parent=1 // pred_check
      _
    $region27: #{tpu_custom_call.1} parent=1 // pred_check_branch
      %79 = sbr.rel (0) target = $region29
    $region28: #{tpu_custom_call.1} parent=1 // pred_region
      %s81 = ssub.s32 16, 16
      %82 = vsyncadd [#allocation5], %s81
      %85 = dma.smem_to_hbm [#allocation8], 16, %s2, [#allocation5]
    $region29: #{tpu_custom_call.1} parent=1 // pred_fallthru
      _
    // Predicated region
    $region30: #{tpu_custom_call.1} parent=1 // pred_check
      _
    $region31: #{tpu_custom_call.1} parent=1 // pred_check_branch
      %87 = sbr.rel (0) target = $region33
    $region32: #{tpu_custom_call.1} parent=1 // pred_region
      %88 = dma.done [#allocation5], 16
    $region33: #{tpu_custom_call.1} parent=1 // pred_fallthru
      _
    %89 = sfence
    %90 = vsyncpa [#allocation4], 1
    %91 = vsyncpa [#allocation7], 1
    %92 = vsyncpa [#allocation5], 1

</llo_original>
